<compile_context>
chip_gen: v7x
topology: tpu7x:2x2x1
jax: 0.10.0
libtpu: 0.0.40
codegen_flags: <defaults>
</compile_context>

<pallas_src>
import jax
import jax.numpy as jnp
from jax.experimental import pallas as pl
from jax.experimental.pallas import tpu as pltpu


def _round_up(x: int, m: int) -> int:
    return ((x + m - 1) // m) * m


def _pairwise_dist_sum_ref(o_flat, t_flat):
    """Plain-JAX reference / tail path: sum of 2-D distances over flat (x,y) pairs."""
    d = o_flat.astype(jnp.float32) - t_flat.astype(jnp.float32)
    d = d.reshape(-1, 2)
    return jnp.sum(jnp.sqrt(jnp.sum(d * d, axis=-1)))


def _make_kernel(tile_rows: int, lanes: int, n_rows: int):
    """Kernel over a (tile_rows, lanes) block of the flat [x0,y0,x1,y1,...] stream."""
    need_row_mask = (n_rows % tile_rows) != 0
    groups = tile_rows // 8

    def kernel(o_ref, t_ref, out_ref):
        # Stream the original dtype; cast in-kernel (no wrapper-side f32 copy).
        d = o_ref[...].astype(jnp.float32) - t_ref[...].astype(jnp.float32)
        sq = d * d
        # Lanes hold [dx0, dy0, dx1, dy1, ...]; bring sq[k+1] to lane k so even
        # lanes of `pair` hold dx_i^2 + dy_i^2.  (jnp.roll == lane shift; the
        # HW-native form is pltpu.roll(sq, shift=lanes-1, axis=1).)
        pair = sq + jnp.roll(sq, -1, axis=1)
        # Keep only even lanes: mask built once from a (1, lanes) iota, applied
        # with a single multiply per vreg (odd / wrap-around lanes -> 0).
        lane_ids = jax.lax.broadcasted_iota(jnp.int32, (1, lanes), 1)
        parity = ((lane_ids % 2) == 0).astype(jnp.float32)
        dist = jnp.sqrt(pair) * parity
        if need_row_mask:
            # Last grid block hangs past the array: zero its garbage rows
            # (jnp.where also kills any NaN/Inf coming from unspecified data).
            i = pl.program_id(0)
            valid_rows = n_rows - i * tile_rows
            row_ids = jax.lax.broadcasted_iota(jnp.int32, (tile_rows, lanes), 0)
            dist = jnp.where(row_ids < valid_rows, dist, 0.0)
        # vreg-wise partial sums: (groups, 8, lanes) splits along the native
        # sublane tiling, so summing axis 0 is pure vreg adds.  Lane-dense
        # (8, lanes) output block -> unmasked stores; final reduce done in JAX.
        out_ref[...] = jnp.sum(dist.reshape(groups, 8, lanes), axis=0)

    return kernel


def euclidean_distance_loss(output, target, *, block_elems=1 << 20,
                            min_kernel_elems=4096):
    """output, target: (B, N, 2) -> scalar f32, same math as the PyTorch module."""
    if output.shape != target.shape or output.shape[-1] != 2:
        raise ValueError("output/target must share a (..., 2) shape")
    if target.dtype != output.dtype:
        target = target.astype(output.dtype)

    o_flat = output.reshape(-1)          # contiguous reshape: free, no HBM pass
    t_flat = target.reshape(-1)
    total = o_flat.shape[0]              # B * N * 2 (always even)

    # Small inputs: fixed kernel/launch overhead dominates -> plain JAX.
    if total < min_kernel_elems:
        return _pairwise_dist_sum_ref(o_flat, t_flat)

    # Kernel covers the 128-aligned prefix; the (<128 element, even) tail is
    # summed in plain JAX.  When total is already 128-aligned (common case)
    # there is no slice and no copy at all.
    main = (total // 128) * 128
    tail = total - main

    itemsize = jnp.dtype(output.dtype).itemsize
    row_align = 8 if itemsize >= 4 else 16      # (8,128) f32 / (16,128) bf16 tiles

    # Lane-dense view: pick the widest lane count that divides the prefix.
    lanes = 128
    for cand in (1024, 512, 256):
        if main % cand == 0 and main // cand >= row_align:
            lanes = cand
            break
    rows = main // lanes                          # >= row_align by construction

    # ~4 MiB f32 (2 MiB bf16) blocks; tile never exceeds the array rows.
    target_rows = max(row_align, ((block_elems // lanes) // row_align) * row_align)
    tile_rows = min(target_rows, (rows // row_align) * row_align)
    grid = pl.cdiv(rows, tile_rows)
    # Give the two v7x TensorCores something to split for medium inputs.
    if grid == 1 and rows >= 2 * row_align:
        tile_rows = _round_up(pl.cdiv(rows, 2), row_align)
        grid = pl.cdiv(rows, tile_rows)

    if tail:
        o_main = o_flat[:main]
        t_main = t_flat[:main]
    else:
        o_main, t_main = o_flat, t_flat
    o2d = o_main.reshape(rows, lanes)             # pure view when tail == 0
    t2d = t_main.reshape(rows, lanes)

    kernel = _make_kernel(tile_rows, lanes, rows)
    in_spec = pl.BlockSpec((tile_rows, lanes), lambda i: (i, 0))
    partials = pl.pallas_call(
        kernel,
        out_shape=jax.ShapeDtypeStruct((8 * grid, lanes), jnp.float32),
        grid=(grid,),
        in_specs=[in_spec, in_spec],
        out_specs=pl.BlockSpec((8, lanes), lambda i: (i, 0)),
        compiler_params=pltpu.CompilerParams(
            dimension_semantics=("parallel",),
            vmem_limit_bytes=40 * 1024 * 1024,
        ),
    )(o2d, t2d)

    loss = jnp.sum(partials)
    if tail:
        loss = loss + _pairwise_dist_sum_ref(o_flat[main:], t_flat[main:])
    return loss


if __name__ == "__main__":
    key = jax.random.PRNGKey(0)
    ks = jax.random.split(key, 8)

    def ref_loss(o, t):
        d = o.astype(jnp.float32) - t.astype(jnp.float32)
        return jnp.sum(jnp.sqrt(jnp.sum(d * d, axis=-1)))

    # 1) Tiny shape from the module spec (batch=2, 16 points): fast path.
    o1 = jax.random.normal(ks[0], (2, 16, 2), dtype=jnp.float32)
    t1 = jax.random.normal(ks[1], (2, 16, 2), dtype=jnp.float32)
    l1 = euclidean_distance_loss(o1, t1)
    jax.block_until_ready(l1)
    assert jnp.allclose(l1, ref_loss(o1, t1), rtol=1e-5, atol=1e-5), (l1, ref_loss(o1, t1))

    # 2) Kernel path: exact (rows, lanes) fit, 2-step parallel grid, no masks.
    o2 = jax.random.normal(ks[2], (2, 4096, 2), dtype=jnp.float32)
    t2 = jax.random.normal(ks[3], (2, 4096, 2), dtype=jnp.float32)
    l2 = euclidean_distance_loss(o2, t2)
    jax.block_until_ready(l2)
    assert jnp.allclose(l2, ref_loss(o2, t2), rtol=1e-5, atol=1e-2), (l2, ref_loss(o2, t2))

    # 3) Kernel path: unaligned tail (JAX) + partial last row-block (in-kernel mask).
    o3 = jax.random.normal(ks[4], (2, 5000, 2), dtype=jnp.float32)
    t3 = jax.random.normal(ks[5], (2, 5000, 2), dtype=jnp.float32)
    l3 = euclidean_distance_loss(o3, t3)
    jax.block_until_ready(l3)
    assert jnp.allclose(l3, ref_loss(o3, t3), rtol=1e-5, atol=1e-2), (l3, ref_loss(o3, t3))

    # 4) bf16 inputs streamed directly (cast to f32 inside the kernel).
    o4 = jax.random.normal(ks[6], (2, 4096, 2), dtype=jnp.float32).astype(jnp.bfloat16)
    t4 = jax.random.normal(ks[7], (2, 4096, 2), dtype=jnp.float32).astype(jnp.bfloat16)
    l4 = euclidean_distance_loss(o4, t4)
    jax.block_until_ready(l4)
    assert jnp.allclose(l4, ref_loss(o4, t4), rtol=1e-4, atol=1e-1), (l4, ref_loss(o4, t4))

    print("KERNEL_OK")
</pallas_src>

<mosaic_0001>
module attributes {stable_mosaic.version = 11 : i64} {
  func.func @kernel(%arg0: i32, %arg1: memref<8x1024xf32, #tpu.memory_space<vmem>>, %arg2: memref<8x1024xf32, #tpu.memory_space<vmem>>, %arg3: memref<8x1024xf32, #tpu.memory_space<vmem>>) attributes {dimension_semantics = [#tpu.dimension_semantics<parallel>], iteration_bounds = array<i64: 2>, scalar_prefetch = 0 : i64, scratch_operands = 0 : i64, tpu.core_type = #tpu.core_type<tc>, window_params = [{transform_indices = @transform_0, window_bounds = array<i64: 8, 1024>}, {transform_indices = @transform_1, window_bounds = array<i64: 8, 1024>}, {transform_indices = @transform_2, window_bounds = array<i64: 8, 1024>}]} {
    %c0 = arith.constant 0 : index
    %c0_0 = arith.constant 0 : index
    %0 = vector.load %arg1[%c0, %c0_0] : memref<8x1024xf32, #tpu.memory_space<vmem>>, vector<8x1024xf32>
    %c0_1 = arith.constant 0 : index
    %c0_2 = arith.constant 0 : index
    %1 = vector.load %arg2[%c0_1, %c0_2] : memref<8x1024xf32, #tpu.memory_space<vmem>>, vector<8x1024xf32>
    %2 = arith.subf %0, %1 : vector<8x1024xf32>
    %3 = arith.mulf %2, %2 : vector<8x1024xf32>
    %4 = vector.extract_strided_slice %3 {offsets = [0, 1], sizes = [8, 1023], strides = [1, 1]} : vector<8x1024xf32> to vector<8x1023xf32>
    %5 = vector.extract_strided_slice %3 {offsets = [0, 0], sizes = [8, 1], strides = [1, 1]} : vector<8x1024xf32> to vector<8x1xf32>
    %6 = tpu.concatenate %4, %5 in 1 : vector<8x1023xf32>, vector<8x1xf32> -> vector<8x1024xf32>
    %7 = arith.addf %3, %6 : vector<8x1024xf32>
    %8 = tpu.iota {dimensions = array<i32: 1>} : vector<1x1024xi32>
    %c2_i32 = arith.constant 2 : i32
    %c0_i32 = arith.constant 0 : i32
    %9 = arith.cmpi eq, %c2_i32, %c0_i32 : i32
    %c1_i32 = arith.constant 1 : i32
    %10 = arith.select %9, %c1_i32, %c2_i32 : i32
    %11 = vector.broadcast %10 : i32 to vector<1x1024xi32>
    %12 = arith.remsi %8, %11 : vector<1x1024xi32>
    %c0_i32_3 = arith.constant 0 : i32
    %13 = vector.broadcast %c0_i32_3 : i32 to vector<1x1024xi32>
    %14 = arith.cmpi ne, %12, %13 : vector<1x1024xi32>
    %c0_i32_4 = arith.constant 0 : i32
    %15 = vector.broadcast %c0_i32_4 : i32 to vector<1x1024xi32>
    %16 = arith.cmpi slt, %12, %15 : vector<1x1024xi32>
    %c0_i32_5 = arith.constant 0 : i32
    %17 = arith.cmpi slt, %10, %c0_i32_5 : i32
    %18 = vector.broadcast %17 : i1 to vector<1x1024xi1>
    %19 = vector.broadcast %18 : vector<1x1024xi1> to vector<1x1024xi1>
    %20 = arith.xori %16, %19 : vector<1x1024xi1>
    %21 = arith.andi %20, %14 : vector<1x1024xi1>
    %22 = vector.broadcast %10 : i32 to vector<1x1024xi32>
    %23 = arith.addi %12, %22 : vector<1x1024xi32>
    %24 = arith.select %21, %23, %12 : vector<1x1024xi1>, vector<1x1024xi32>
    %c0_i32_6 = arith.constant 0 : i32
    %25 = vector.broadcast %c0_i32_6 : i32 to vector<1x1024xi32>
    %26 = arith.cmpi eq, %24, %25 : vector<1x1024xi32>
    %27 = arith.extui %26 : vector<1x1024xi1> to vector<1x1024xi32>
    %28 = arith.sitofp %27 : vector<1x1024xi32> to vector<1x1024xf32>
    %29 = math.sqrt %7 : vector<8x1024xf32>
    %30 = vector.broadcast %28 : vector<1x1024xf32> to vector<8x1024xf32>
    %31 = arith.mulf %29, %30 : vector<8x1024xf32>
    %32 = vector.shape_cast %31 : vector<8x1024xf32> to vector<1x8x1024xf32>
    %cst = arith.constant dense<0.000000e+00> : vector<8x1024xf32>
    %33 = vector.multi_reduction <add>, %32, %cst [0] : vector<1x8x1024xf32> to vector<8x1024xf32>
    %c0_7 = arith.constant 0 : index
    %c0_8 = arith.constant 0 : index
    %34 = vector.load %arg3[%c0_7, %c0_8] : memref<8x1024xf32, #tpu.memory_space<vmem>>, vector<8x1024xf32>
    tpu.vector_store %arg3[%c0_7, %c0_8], %33 {strides = array<i32>} : memref<8x1024xf32, #tpu.memory_space<vmem>>, vector<8x1024xf32>,
    return
  }
  func.func @transform_0(%arg0: i32) -> (i32, i32) {
    %c0_i32 = arith.constant 0 : i32
    %c0_i32_0 = arith.constant 0 : i32
    return %arg0, %c0_i32 : i32, i32
  }
  func.func @transform_1(%arg0: i32) -> (i32, i32) {
    %c0_i32 = arith.constant 0 : i32
    %c0_i32_0 = arith.constant 0 : i32
    return %arg0, %c0_i32 : i32, i32
  }
  func.func @transform_2(%arg0: i32) -> (i32, i32) {
    %c0_i32 = arith.constant 0 : i32
    %c0_i32_0 = arith.constant 0 : i32
    return %arg0, %c0_i32 : i32, i32
  }
}

</mosaic_0001>

<llo_original>
// kernel: tpu_custom_call.1
$region0: #{tpu_custom_call.1}
  #allocation0 [shape = 'u32[]', space=smem, size = 0x4, offset = 0x4, fixed_abs, tag = 'smem constant byte address 0x4 - core index']
  #allocation1 [shape = 'u32[144,128]{1,0:T(1,128)}', space=vmem, size = 0x12000, scoped, tag = 'internal scratch']
  %s0 = inlined_call_operand.hbm [shape: f32[16,1024], index: 0, kind: input, shape index: {}]
  %s1 = inlined_call_operand.hbm [shape: f32[16,1024], index: 1, kind: input, shape index: {}]
  %s2 = inlined_call_operand.hbm [shape: f32[16,1024], index: 2, kind: output, shape index: {}]
  %s3 = sld [smem:[#allocation0]]
  $region49: #{tpu_custom_call.1} parent=0
    _
  %s5 = ssub.s32 1, %s3
  %s6 = scalar_select 0, %s5, %s3
  $region1: #{tpu_custom_call.1} parent=0
    #allocation2 [shape = 'u8[65536]{0}', space=vmem, size = 0x10000, scoped, tag = 'input window, operand 0']
    #allocation3 [shape = 's32[2]{0}', space=sflag, size = 0x8, scoped, tag = 'scoped memory for tpu_custom_call.1']
    #allocation4 [shape = 's32[2]{0}', space=sflag, size = 0x8, scoped, tag = 'scoped memory for tpu_custom_call.1']
    #allocation5 [shape = 'u8[65536]{0}', space=vmem, size = 0x10000, scoped, tag = 'input window, operand 1']
    #allocation6 [shape = 's32[2]{0}', space=sflag, size = 0x8, scoped, tag = 'scoped memory for tpu_custom_call.1']
    #allocation7 [shape = 'u8[65536]{0}', space=vmem, size = 0x10000, scoped, tag = 'output window, operand 0']
    %7 = vsyncpa [#allocation3], 0
    %s8 = scalar_lea.sflag [#allocation3], 1
    %9 = vsyncpa %s8, 0
    %10 = vsyncpa [#allocation6], 0
    %s11 = scalar_lea.sflag [#allocation6], 1
    %12 = vsyncpa %s11, 0
    %13 = vsyncpa [#allocation4], 0
    %s14 = scalar_lea.sflag [#allocation4], 1
    %15 = vsyncpa %s14, 0
    loop: start=0, step=1, limit=4
    $region2: #{tpu_custom_call.1} parent=1 // loop_pre_header
      _
    $region3: #{tpu_custom_call.1} parent=1 // loop_header
      %s17 = sphi 0, %s21
      %p18 = scmp.ge.s32.totalorder %s17, 4
      %s27 = sphi 0, %s29
      %s30 = sphi 0, %s27
      %s31 = sphi 0, %s30
      %s47 = sphi 0, %s31
      %s53 = sphi 0, %s55
      %s56 = sphi 0, %s53
      %s57 = sphi 0, %s56
      %s73 = sphi 0, %s57
      %s79 = sphi 0, %s81
      %s82 = sphi 0, %s79
      %s83 = sphi 0, %s82
      %s99 = sphi 0, %s83
    $region4: #{tpu_custom_call.1} parent=1 // loop_header_branch
      %20 = sbr.rel (%p18) target = $region8
    $region5: #{tpu_custom_call.1} parent=1 // loop_body
      %s22 = ssub.s32 %s17, 1
      %s23 = ssub.s32 %s17, 2
      %s24 = sadd.s32 %s17, 1
      %s25 = ssub.s32 %s17, %s24
      %p26 = scmp.eq.s32.totalorder %s25, 0
      %s28 = sadd.s32 %s27, 1
      %s29 = scalar_select %p26, %s27, %s28
      %p32 = pneg %p26
      %p33 = scmp.eq.s32.totalorder %s17, 1
      %p34 = por %p32, %p33
      %p35 = scmp.ne.s32.totalorder %s27, %s30
      %p36 = scmp.eq.s32.totalorder %s17, 0
      %p37 = por %p35, %p36
      %p38 = scmp.ne.s32.totalorder %s27, %s30
      %p39 = scmp.eq.s32.totalorder %s22, 1
      %p40 = por %p38, %p39
      %p41 = scmp.ne.s32.totalorder %s30, %s31
      %p42 = scmp.eq.s32.totalorder %s22, 0
      %p43 = por %p41, %p42
      %p44 = scmp.ne.s32.totalorder %s30, %s31
      %p45 = scmp.eq.s32.totalorder %s23, 1
      %p46 = por %p44, %p45
      %p48 = scmp.ne.s32.totalorder %s31, %s47
      %p49 = scmp.eq.s32.totalorder %s23, 0
      %p50 = por %p48, %p49
      %s51 = ssub.s32 %s17, %s24
      %p52 = scmp.eq.s32.totalorder %s51, 0
      %s54 = sadd.s32 %s53, 1
      %s55 = scalar_select %p52, %s53, %s54
      %p58 = pneg %p52
      %p59 = scmp.eq.s32.totalorder %s17, 1
      %p60 = por %p58, %p59
      %p61 = scmp.ne.s32.totalorder %s53, %s56
      %p62 = scmp.eq.s32.totalorder %s17, 0
      %p63 = por %p61, %p62
      %p64 = scmp.ne.s32.totalorder %s53, %s56
      %p65 = scmp.eq.s32.totalorder %s22, 1
      %p66 = por %p64, %p65
      %p67 = scmp.ne.s32.totalorder %s56, %s57
      %p68 = scmp.eq.s32.totalorder %s22, 0
      %p69 = por %p67, %p68
      %p70 = scmp.ne.s32.totalorder %s56, %s57
      %p71 = scmp.eq.s32.totalorder %s23, 1
      %p72 = por %p70, %p71
      %p74 = scmp.ne.s32.totalorder %s57, %s73
      %p75 = scmp.eq.s32.totalorder %s23, 0
      %p76 = por %p74, %p75
      %s77 = ssub.s32 %s17, %s24
      %p78 = scmp.eq.s32.totalorder %s77, 0
      %s80 = sadd.s32 %s79, 1
      %s81 = scalar_select %p78, %s79, %s80
      %p84 = pneg %p78
      %p85 = scmp.eq.s32.totalorder %s17, 1
      %p86 = por %p84, %p85
      %p87 = scmp.ne.s32.totalorder %s79, %s82
      %p88 = scmp.eq.s32.totalorder %s17, 0
      %p89 = por %p87, %p88
      %p90 = scmp.ne.s32.totalorder %s79, %s82
      %p91 = scmp.eq.s32.totalorder %s22, 1
      %p92 = por %p90, %p91
      %p93 = scmp.ne.s32.totalorder %s82, %s83
      %p94 = scmp.eq.s32.totalorder %s22, 0
      %p95 = por %p93, %p94
      %p96 = scmp.ne.s32.totalorder %s82, %s83
      %p97 = scmp.eq.s32.totalorder %s23, 1
      %p98 = por %p96, %p97
      %p100 = scmp.ne.s32.totalorder %s83, %s99
      %p101 = scmp.eq.s32.totalorder %s23, 0
      %p102 = por %p100, %p101
      %p103 = scmp.le.s32.totalorder 1, %s17
      %p104 = scmp.lt.s32.totalorder %s17, 3
      %p105 = pnand %p103, %p104
      %p106 = pneg %p105
      // Predicated region
      $region9: #{tpu_custom_call.1} parent=5 // pred_check
        _
      $region10: #{tpu_custom_call.1} parent=5 // pred_check_branch
        %108 = sbr.rel (%p105) target = $region12
      $region11: #{tpu_custom_call.1} parent=5 // pred_region
        %s109 = ssub.s32 %s17, 1
      $region12: #{tpu_custom_call.1} parent=5 // pred_fallthru
        _
      %p110 = scmp.lt.s32.totalorder %s17, 2
      // Predicated region
      $region13: #{tpu_custom_call.1} parent=5 // pred_check
        %p111 = pneg %p110
      $region14: #{tpu_custom_call.1} parent=5 // pred_check_branch
        %113 = sbr.rel (%p111) target = $region16
      $region15: #{tpu_custom_call.1} parent=5 // pred_region
        // Predicated region
        $region17: #{tpu_custom_call.1} parent=15 // pred_check
          %p114 = pneg %p37
        $region18: #{tpu_custom_call.1} parent=15 // pred_check_branch
          %116 = sbr.rel (%p114) target = $region20
        $region19: #{tpu_custom_call.1} parent=15 // pred_region
          %s117 = sand.u32 %s27, 1
          %s118 = scalar_lea.sflag [#allocation3], %s117
          %s119 = sand.u32 %s27, 1
          %s120 = smul.addr %s119, 64
          %s121 = scalar_lea.vmem [#allocation2], %s120
          %s123 = ssub.s32 1024, 1024
          %124 = vsyncadd %s118, %s123
          %s125 = smul.addr %s17, 8
          %s126 = smul.addr %s125, 128
          %s127 = scalar_lea.hbm %s0, %s126
          %s129 = sshll.u32 %s121, 4
          %s130 = int_to_ptr.vmem [resolvable:$true] %s129
          %132 = dma.hbm_to_vmem [thread:$0]  %s127, 1024, %s130, %s118
        $region20: #{tpu_custom_call.1} parent=15 // pred_fallthru
          _
        // Predicated region
        $region21: #{tpu_custom_call.1} parent=15 // pred_check
          %p133 = pneg %p63
        $region22: #{tpu_custom_call.1} parent=15 // pred_check_branch
          %135 = sbr.rel (%p133) target = $region24
        $region23: #{tpu_custom_call.1} parent=15 // pred_region
          %s136 = sand.u32 %s53, 1
          %s137 = scalar_lea.sflag [#allocation6], %s136
          %s138 = sand.u32 %s53, 1
          %s139 = smul.addr %s138, 64
          %s140 = scalar_lea.vmem [#allocation5], %s139
          %s142 = ssub.s32 1024, 1024
          %143 = vsyncadd %s137, %s142
          %s144 = smul.addr %s17, 8
          %s145 = smul.addr %s144, 128
          %s146 = scalar_lea.hbm %s1, %s145
          %s148 = sshll.u32 %s140, 4
          %s149 = int_to_ptr.vmem [resolvable:$true] %s148
          %151 = dma.hbm_to_vmem [thread:$0]  %s146, 1024, %s149, %s137
        $region24: #{tpu_custom_call.1} parent=15 // pred_fallthru
          _
      $region16: #{tpu_custom_call.1} parent=5 // pred_fallthru
        _
      %p152 = scmp.le.s32.totalorder 1, %s17
      %p153 = scmp.lt.s32.totalorder %s17, 3
      %p154 = pnand %p152, %p153
      %p155 = pneg %p154
      // Predicated region
      $region25: #{tpu_custom_call.1} parent=5 // pred_check
        _
      $region26: #{tpu_custom_call.1} parent=5 // pred_check_branch
        %157 = sbr.rel (%p154) target = $region28
      $region27: #{tpu_custom_call.1} parent=5 // pred_region
        %s158 = ssub.s32 %s17, 1
        %s159 = sand.u32 %s30, 1
        %s160 = scalar_lea.sflag [#allocation3], %s159
        %s161 = sand.u32 %s30, 1
        %s162 = smul.addr %s161, 64
        %s163 = scalar_lea.vmem [#allocation2], %s162
        // Predicated region
        $region29: #{tpu_custom_call.1} parent=27 // pred_check
          %p164 = pneg %p43
        $region30: #{tpu_custom_call.1} parent=27 // pred_check_branch
          %166 = sbr.rel (%p164) target = $region32
        $region31: #{tpu_custom_call.1} parent=27 // pred_region
          %167 = dma.done %s160, 1024
        $region32: #{tpu_custom_call.1} parent=27 // pred_fallthru
          _
        %s168 = sand.u32 %s56, 1
        %s169 = scalar_lea.sflag [#allocation6], %s168
        %s170 = sand.u32 %s56, 1
        %s171 = smul.addr %s170, 64
        %s172 = scalar_lea.vmem [#allocation5], %s171
        // Predicated region
        $region33: #{tpu_custom_call.1} parent=27 // pred_check
          %p173 = pneg %p69
        $region34: #{tpu_custom_call.1} parent=27 // pred_check_branch
          %175 = sbr.rel (%p173) target = $region36
        $region35: #{tpu_custom_call.1} parent=27 // pred_region
          %176 = dma.done %s169, 1024
        $region36: #{tpu_custom_call.1} parent=27 // pred_fallthru
          _
        %s177 = sand.u32 %s30, 1
        %s178 = scalar_lea.sflag [#allocation3], %s177
        %s179 = sand.u32 %s30, 1
        %s180 = smul.addr %s179, 64
        %s181 = scalar_lea.vmem [#allocation2], %s180
        %p182 = pneg %p43
        %p183 = pneg %p40
        %s184 = sand.u32 %s56, 1
        %s185 = scalar_lea.sflag [#allocation6], %s184
        %s186 = sand.u32 %s56, 1
        %s187 = smul.addr %s186, 64
        %s188 = scalar_lea.vmem [#allocation5], %s187
        %p189 = pneg %p69
        %p190 = pneg %p66
        %p191 = pneg %p95
        %p192 = pneg %p92
        %s193 = sand.u32 %s82, 1
        %s194 = scalar_lea.sflag [#allocation4], %s193
        %s195 = sand.u32 %s82, 1
        %s196 = smul.addr %s195, 64
        %s197 = scalar_lea.vmem [#allocation7], %s196
        %v198 = vld [vmem:[%s163] sm:$0xff]
        %v199 = vld [vmem:[%s163 + $0x8] sm:$0xff]
        %v200 = vld [vmem:[%s163 + $0x10] sm:$0xff]
        %v201 = vld [vmem:[%s163 + $0x18] sm:$0xff]
        %v202 = vld [vmem:[%s163 + $0x20] sm:$0xff]
        %v203 = vld [vmem:[%s163 + $0x28] sm:$0xff]
        %v204 = vld [vmem:[%s163 + $0x30] sm:$0xff]
        %v205 = vld [vmem:[%s163 + $0x38] sm:$0xff]
        %v206 = vld [vmem:[%s172] sm:$0xff]
        %v207 = vld [vmem:[%s172 + $0x8] sm:$0xff]
        %v208 = vld [vmem:[%s172 + $0x10] sm:$0xff]
        %v209 = vld [vmem:[%s172 + $0x18] sm:$0xff]
        %v210 = vld [vmem:[%s172 + $0x20] sm:$0xff]
        %v211 = vld [vmem:[%s172 + $0x28] sm:$0xff]
        %v212 = vld [vmem:[%s172 + $0x30] sm:$0xff]
        %v213 = vld [vmem:[%s172 + $0x38] sm:$0xff]
        %v214 = vsub.f32 %v198, %v206
        %v215 = vsub.f32 %v199, %v207
        %v216 = vsub.f32 %v200, %v208
        %v217 = vsub.f32 %v201, %v209
        %v218 = vsub.f32 %v202, %v210
        %v219 = vsub.f32 %v203, %v211
        %v220 = vsub.f32 %v204, %v212
        %v221 = vsub.f32 %v205, %v213
        %v222 = vmul.f32 %v214, %v214
        %v223 = vmul.f32 %v215, %v215
        %v224 = vmul.f32 %v216, %v216
        %v225 = vmul.f32 %v217, %v217
        %v226 = vmul.f32 %v218, %v218
        %v227 = vmul.f32 %v219, %v219
        %v228 = vmul.f32 %v220, %v220
        %v229 = vmul.f32 %v221, %v221
        %238 = vrot.lane.b32.xlu0 %v222, 127
        %v239 = vpop.permute.xlu0 %238
        %240 = vrot.lane.b32.xlu0 %v223, 127
        %v241 = vpop.permute.xlu0 %240
        %242 = vrot.lane.b32.xlu0 %v224, 127
        %v243 = vpop.permute.xlu0 %242
        %244 = vrot.lane.b32.xlu0 %v225, 127
        %v245 = vpop.permute.xlu0 %244
        %246 = vrot.lane.b32.xlu0 %v226, 127
        %v247 = vpop.permute.xlu0 %246
        %248 = vrot.lane.b32.xlu0 %v227, 127
        %v249 = vpop.permute.xlu0 %248
        %250 = vrot.lane.b32.xlu0 %v228, 127
        %v251 = vpop.permute.xlu0 %250
        %252 = vrot.lane.b32.xlu0 %v229, 127
        %v253 = vpop.permute.xlu0 %252
        %vm254 = vcmask 1039360
        %v255 = vsel %vm254, %v239, %v241
        %v256 = vsel %vm254, %v241, %v243
        %v257 = vsel %vm254, %v243, %v245
        %v258 = vsel %vm254, %v245, %v247
        %v259 = vsel %vm254, %v247, %v249
        %v260 = vsel %vm254, %v249, %v251
        %v261 = vsel %vm254, %v251, %v253
        %v271 = vsel %vm254, %v253, %v239
        %v272 = vadd.f32 %v222, %v255
        %v273 = vadd.f32 %v223, %v256
        %v274 = vadd.f32 %v224, %v257
        %v275 = vadd.f32 %v225, %v258
        %v276 = vadd.f32 %v226, %v259
        %v277 = vadd.f32 %v227, %v260
        %v278 = vadd.f32 %v228, %v261
        %v279 = vadd.f32 %v229, %v271
        %v280 = vlaneseq
        %v281 = vand.u32 %v280, 127
        %v282 = vadd.s32 %v281, 128
        %v283 = vadd.s32 %v281, 256
        %v284 = vadd.s32 %v281, 384
        %v285 = vadd.s32 %v281, 512
        %v286 = vadd.s32 %v281, 640
        %v287 = vadd.s32 %v281, 768
        %v288 = vadd.s32 %v281, 896
        %vm289 = vcmp.lt.s32.totalorder %v281, 0
        %v290 = vsub.s32 0, %v281
        %v291 = vsel %vm289, %v290, %v281
        %v292 = vshrl.u32 %v291, 1
        %v293 = vand.u32 %v291, 1
        %v294 = vsub.s32 0, %v293
        %v295 = vsel %vm289, %v294, %v293
        %vm296 = vcmp.lt.s32.totalorder %v282, 0
        %v297 = vsub.s32 0, %v282
        %v298 = vsel %vm296, %v297, %v282
        %v299 = vshrl.u32 %v298, 1
        %v300 = vand.u32 %v298, 1
        %v301 = vsub.s32 0, %v300
        %v302 = vsel %vm296, %v301, %v300
        %vm303 = vcmp.lt.s32.totalorder %v283, 0
        %v304 = vsub.s32 0, %v283
        %v305 = vsel %vm303, %v304, %v283
        %v306 = vshrl.u32 %v305, 1
        %v307 = vand.u32 %v305, 1
        %v308 = vsub.s32 0, %v307
        %v309 = vsel %vm303, %v308, %v307
        %vm310 = vcmp.lt.s32.totalorder %v284, 0
        %v311 = vsub.s32 0, %v284
        %v312 = vsel %vm310, %v311, %v284
        %v313 = vshrl.u32 %v312, 1
        %v314 = vand.u32 %v312, 1
        %v315 = vsub.s32 0, %v314
        %v316 = vsel %vm310, %v315, %v314
        %vm317 = vcmp.lt.s32.totalorder %v285, 0
        %v318 = vsub.s32 0, %v285
        %v319 = vsel %vm317, %v318, %v285
        %v320 = vshrl.u32 %v319, 1
        %v321 = vand.u32 %v319, 1
        %v322 = vsub.s32 0, %v321
        %v323 = vsel %vm317, %v322, %v321
        %vm324 = vcmp.lt.s32.totalorder %v286, 0
        %v325 = vsub.s32 0, %v286
        %v326 = vsel %vm324, %v325, %v286
        %v327 = vshrl.u32 %v326, 1
        %v328 = vand.u32 %v326, 1
        %v329 = vsub.s32 0, %v328
        %v330 = vsel %vm324, %v329, %v328
        %vm331 = vcmp.lt.s32.totalorder %v287, 0
        %v332 = vsub.s32 0, %v287
        %v333 = vsel %vm331, %v332, %v287
        %v334 = vshrl.u32 %v333, 1
        %v335 = vand.u32 %v333, 1
        %v336 = vsub.s32 0, %v335
        %v337 = vsel %vm331, %v336, %v335
        %vm338 = vcmp.lt.s32.totalorder %v288, 0
        %v339 = vsub.s32 0, %v288
        %v340 = vsel %vm338, %v339, %v288
        %v341 = vshrl.u32 %v340, 1
        %v342 = vand.u32 %v340, 1
        %v343 = vsub.s32 0, %v342
        %v344 = vsel %vm338, %v343, %v342
        %vm345 = vcmp.ne.s32.totalorder %v295, 0
        %vm346 = vcmp.ne.s32.totalorder %v302, 0
        %vm347 = vcmp.ne.s32.totalorder %v309, 0
        %vm348 = vcmp.ne.s32.totalorder %v316, 0
        %vm349 = vcmp.ne.s32.totalorder %v323, 0
        %vm350 = vcmp.ne.s32.totalorder %v330, 0
        %vm351 = vcmp.ne.s32.totalorder %v337, 0
        %vm352 = vcmp.ne.s32.totalorder %v344, 0
        %vm353 = vcmp.lt.s32.totalorder %v295, 0
        %vm354 = vcmp.lt.s32.totalorder %v302, 0
        %vm355 = vcmp.lt.s32.totalorder %v309, 0
        %vm356 = vcmp.lt.s32.totalorder %v316, 0
        %vm357 = vcmp.lt.s32.totalorder %v323, 0
        %vm358 = vcmp.lt.s32.totalorder %v330, 0
        %vm359 = vcmp.lt.s32.totalorder %v337, 0
        %vm360 = vcmp.lt.s32.totalorder %v344, 0
        %vm361 = vmand %vm353, %vm345
        %vm362 = vmand %vm354, %vm346
        %vm363 = vmand %vm355, %vm347
        %vm364 = vmand %vm356, %vm348
        %vm365 = vmand %vm357, %vm349
        %vm366 = vmand %vm358, %vm350
        %vm367 = vmand %vm359, %vm351
        %vm368 = vmand %vm360, %vm352
        %v369 = vadd.s32 %v295, 2
        %v370 = vadd.s32 %v302, 2
        %v371 = vadd.s32 %v309, 2
        %v372 = vadd.s32 %v316, 2
        %v373 = vadd.s32 %v323, 2
        %v374 = vadd.s32 %v330, 2
        %v375 = vadd.s32 %v337, 2
        %v376 = vadd.s32 %v344, 2
        %v377 = vsel %vm361, %v369, %v295
        %v378 = vsel %vm362, %v370, %v302
        %v379 = vsel %vm363, %v371, %v309
        %v380 = vsel %vm364, %v372, %v316
        %v381 = vsel %vm365, %v373, %v323
        %v382 = vsel %vm366, %v374, %v330
        %v383 = vsel %vm367, %v375, %v337
        %v384 = vsel %vm368, %v376, %v344
        %vm385 = vcmp.eq.s32.totalorder %v377, 0
        %vm386 = vcmp.eq.s32.totalorder %v378, 0
        %vm387 = vcmp.eq.s32.totalorder %v379, 0
        %vm388 = vcmp.eq.s32.totalorder %v380, 0
        %vm389 = vcmp.eq.s32.totalorder %v381, 0
        %vm390 = vcmp.eq.s32.totalorder %v382, 0
        %vm391 = vcmp.eq.s32.totalorder %v383, 0
        %vm392 = vcmp.eq.s32.totalorder %v384, 0
        %v393 = vsel %vm385, 1, 0
        %v394 = vsel %vm386, 1, 0
        %v395 = vsel %vm387, 1, 0
        %v396 = vsel %vm388, 1, 0
        %v397 = vsel %vm389, 1, 0
        %v398 = vsel %vm390, 1, 0
        %v399 = vsel %vm391, 1, 0
        %v400 = vsel %vm392, 1, 0
        %v401 = vcvt.s32.f32 %v393
        %v402 = vcvt.s32.f32 %v394
        %v403 = vcvt.s32.f32 %v395
        %v404 = vcvt.s32.f32 %v396
        %v405 = vcvt.s32.f32 %v397
        %v406 = vcvt.s32.f32 %v398
        %v407 = vcvt.s32.f32 %v399
        %v408 = vcvt.s32.f32 %v400
        %v409 = vrsqrt.pop %v272
        %v410 = vmul.f32 %v272, %v409
        %vm411 = vcmp.eq.f32.partialorder %v272, inf
        %v412 = vsel %vm411, %v272, %v410
        %vm413 = vcmp.eq.f32.partialorder %v272, 0.0
        %v414 = vand.u32 %v272, 2147483648
        %v415 = vsel %vm413, %v414, %v412
        %v416 = vrsqrt.pop %v273
        %v417 = vmul.f32 %v273, %v416
        %vm418 = vcmp.eq.f32.partialorder %v273, inf
        %v419 = vsel %vm418, %v273, %v417
        %vm420 = vcmp.eq.f32.partialorder %v273, 0.0
        %v421 = vand.u32 %v273, 2147483648
        %v422 = vsel %vm420, %v421, %v419
        %v423 = vrsqrt.pop %v274
        %v424 = vmul.f32 %v274, %v423
        %vm425 = vcmp.eq.f32.partialorder %v274, inf
        %v426 = vsel %vm425, %v274, %v424
        %vm427 = vcmp.eq.f32.partialorder %v274, 0.0
        %v428 = vand.u32 %v274, 2147483648
        %v429 = vsel %vm427, %v428, %v426
        %v430 = vrsqrt.pop %v275
        %v431 = vmul.f32 %v275, %v430
        %vm432 = vcmp.eq.f32.partialorder %v275, inf
        %v433 = vsel %vm432, %v275, %v431
        %vm434 = vcmp.eq.f32.partialorder %v275, 0.0
        %v435 = vand.u32 %v275, 2147483648
        %v436 = vsel %vm434, %v435, %v433
        %v437 = vrsqrt.pop %v276
        %v438 = vmul.f32 %v276, %v437
        %vm439 = vcmp.eq.f32.partialorder %v276, inf
        %v440 = vsel %vm439, %v276, %v438
        %vm441 = vcmp.eq.f32.partialorder %v276, 0.0
        %v442 = vand.u32 %v276, 2147483648
        %v443 = vsel %vm441, %v442, %v440
        %v444 = vrsqrt.pop %v277
        %v445 = vmul.f32 %v277, %v444
        %vm446 = vcmp.eq.f32.partialorder %v277, inf
        %v447 = vsel %vm446, %v277, %v445
        %vm448 = vcmp.eq.f32.partialorder %v277, 0.0
        %v449 = vand.u32 %v277, 2147483648
        %v450 = vsel %vm448, %v449, %v447
        %v451 = vrsqrt.pop %v278
        %v452 = vmul.f32 %v278, %v451
        %vm453 = vcmp.eq.f32.partialorder %v278, inf
        %v454 = vsel %vm453, %v278, %v452
        %vm455 = vcmp.eq.f32.partialorder %v278, 0.0
        %v456 = vand.u32 %v278, 2147483648
        %v457 = vsel %vm455, %v456, %v454
        %v458 = vrsqrt.pop %v279
        %v459 = vmul.f32 %v279, %v458
        %vm460 = vcmp.eq.f32.partialorder %v279, inf
        %v461 = vsel %vm460, %v279, %v459
        %vm462 = vcmp.eq.f32.partialorder %v279, 0.0
        %v463 = vand.u32 %v279, 2147483648
        %v464 = vsel %vm462, %v463, %v461
        %v465 = vmul.f32 %v415, %v401
        %v466 = vmul.f32 %v422, %v402
        %v467 = vmul.f32 %v429, %v403
        %v468 = vmul.f32 %v436, %v404
        %v469 = vmul.f32 %v443, %v405
        %v470 = vmul.f32 %v450, %v406
        %v471 = vmul.f32 %v457, %v407
        %v472 = vmul.f32 %v464, %v408
        %v473 = vadd.f32 %v465, 0.0
        %v474 = vadd.f32 %v466, 0.0
        %v475 = vadd.f32 %v467, 0.0
        %v476 = vadd.f32 %v468, 0.0
        %v477 = vadd.f32 %v469, 0.0
        %v478 = vadd.f32 %v470, 0.0
        %v479 = vadd.f32 %v471, 0.0
        %v480 = vadd.f32 %v472, 0.0
        %481 = vst [vmem:[%s197] sm:$0xff] %v473
        %482 = vst [vmem:[%s197 + $0x8] sm:$0xff] %v474
        %483 = vst [vmem:[%s197 + $0x10] sm:$0xff] %v475
        %484 = vst [vmem:[%s197 + $0x18] sm:$0xff] %v476
        %485 = vst [vmem:[%s197 + $0x20] sm:$0xff] %v477
        %486 = vst [vmem:[%s197 + $0x28] sm:$0xff] %v478
        %487 = vst [vmem:[%s197 + $0x30] sm:$0xff] %v479
        %488 = vst [vmem:[%s197 + $0x38] sm:$0xff] %v480
        %s489 = sand.u32 %s82, 1
        %s490 = scalar_lea.sflag [#allocation4], %s489
        %s491 = sand.u32 %s82, 1
        %s492 = smul.addr %s491, 64
        %s493 = scalar_lea.vmem [#allocation7], %s492
        // Predicated region
        $region37: #{tpu_custom_call.1} parent=27 // pred_check
          %p494 = pneg %p92
        $region38: #{tpu_custom_call.1} parent=27 // pred_check_branch
          %496 = sbr.rel (%p494) target = $region40
        $region39: #{tpu_custom_call.1} parent=27 // pred_region
          %s498 = ssub.s32 1024, 1024
          %499 = vsyncadd %s490, %s498
          %s500 = smul.addr %s22, 8
          %s501 = smul.addr %s500, 128
          %s502 = scalar_lea.hbm %s2, %s501
          %s504 = sshll.u32 %s493, 4
          %s505 = int_to_ptr.vmem [resolvable:$true] %s504
          %507 = dma.vmem_to_hbm [thread:$0]  %s505, 1024, %s502, %s490
        $region40: #{tpu_custom_call.1} parent=27 // pred_fallthru
          _
      $region28: #{tpu_custom_call.1} parent=5 // pred_fallthru
        _
      %p508 = scmp.le.s32.totalorder 2, %s17
      // Predicated region
      $region41: #{tpu_custom_call.1} parent=5 // pred_check
        %p509 = pneg %p508
      $region42: #{tpu_custom_call.1} parent=5 // pred_check_branch
        %511 = sbr.rel (%p509) target = $region44
      $region43: #{tpu_custom_call.1} parent=5 // pred_region
        %s512 = ssub.s32 %s17, 2
        // Predicated region
        $region45: #{tpu_custom_call.1} parent=43 // pred_check
          %p513 = pneg %p98
        $region46: #{tpu_custom_call.1} parent=43 // pred_check_branch
          %515 = sbr.rel (%p513) target = $region48
        $region47: #{tpu_custom_call.1} parent=43 // pred_region
          %s516 = sand.u32 %s83, 1
          %s517 = scalar_lea.sflag [#allocation4], %s516
          %s518 = sand.u32 %s83, 1
          %s519 = smul.addr %s518, 64
          %s520 = scalar_lea.vmem [#allocation7], %s519
          %521 = dma.done %s517, 1024
        $region48: #{tpu_custom_call.1} parent=43 // pred_fallthru
          _
      $region44: #{tpu_custom_call.1} parent=5 // pred_fallthru
        _
    $region6: #{tpu_custom_call.1} parent=1 // loop_footer
      %s21 = sadd.s32 1, %s17
    $region7: #{tpu_custom_call.1} parent=1 // loop_footer_branch
      %16 = sbr.rel target = $region3
    $region8: #{tpu_custom_call.1} parent=1 // loop_exit
      _
    %522 = vsyncpa [#allocation3], 1
    %s523 = scalar_lea.sflag [#allocation3], 1
    %524 = vsyncpa %s523, 1
    %525 = vsyncpa [#allocation6], 1
    %s526 = scalar_lea.sflag [#allocation6], 1
    %527 = vsyncpa %s526, 1
    %528 = vsyncpa [#allocation4], 1
    %s529 = scalar_lea.sflag [#allocation4], 1
    %530 = vsyncpa %s529, 1

</llo_original>
